<compile_context>
chip_gen: v7x
topology: tpu7x:2x2x1
jax: 0.10.0
libtpu: 0.0.40
codegen_flags: <defaults>
</compile_context>

<pallas_src>
import functools

import jax
import jax.numpy as jnp
from jax.experimental import pallas as pl
from jax.experimental.pallas import tpu as pltpu


def _round_up(x, m):
    return ((x + m - 1) // m) * m


def _vmem_limit_bytes():
    """Scoped-VMEM limit per generation, with ~25% headroom below physical."""
    cap = 0
    try:
        cap = int(getattr(pltpu.get_tpu_info(), "vmem_capacity_bytes", 0))
    except Exception:
        cap = 0
    if cap <= 0:
        cap = 64 * 1024 * 1024  # conservative fallback (v7x per-TC VMEM)
    return min(cap * 3 // 4, 100 * 1024 * 1024)


def _label_smoothing_kernel(pred_ref, target_ref, out_ref, *,
                            smoothing, classes, total_b, tile_b):
    # pred_ref:   (TILE_B, C) logits tile in VMEM (f32 or bf16)
    # target_ref: (B_lab, 1) int32 labels, resident in VMEM for the whole kernel
    # out_ref:    (8, 128) f32 block; partial sum of this tile's losses at [0,0]
    pid = pl.program_id(0)

    logits = pred_ref[...].astype(jnp.float32)                       # (TB, C)
    tb, c = logits.shape

    base = pl.multiple_of(pid * tile_b, 8)
    tgt = target_ref[pl.ds(base, tile_b), :]                          # (TB, 1) int32

    # One pass over the raw logits: row max, row sum, and the target logit
    # (gather via compare+select).  `shifted` is only needed for exp/expsum.
    row_max = jnp.max(logits, axis=-1, keepdims=True)                 # (TB, 1)
    row_sum = jnp.sum(logits, axis=-1, keepdims=True)                 # (TB, 1)
    cls_ids = jax.lax.broadcasted_iota(jnp.int32, (tb, c), 1)
    tgt_logit = jnp.sum(jnp.where(cls_ids == tgt, logits, 0.0),
                        axis=-1, keepdims=True)                       # (TB, 1)

    lse = jnp.log(jnp.sum(jnp.exp(logits - row_max),
                          axis=-1, keepdims=True))                    # (TB, 1)

    confidence = 1.0 - smoothing
    off = smoothing / (classes - 1)
    # loss_i = -sum_j true_dist_ij * logp_ij   (using sum_j true_dist_ij == 1)
    #        = (m_i + lse_i) - off*sum_j logits_ij - (conf-off)*logits_i[target_i]
    per_example = (row_max + lse) - off * row_sum - (confidence - off) * tgt_logit

    # Mask rows of the ragged tail tile (their garbage logits may be NaN/inf
    # after exp; select safely replaces them with 0 before the reduction).
    row_ids = base + jax.lax.broadcasted_iota(jnp.int32, (tb, 1), 0)
    masked = jnp.where(row_ids < total_b, per_example, 0.0)

    # In-kernel reduction -> lane-dense single-vreg store (no masked vst.msk,
    # no follow-up XLA reduction over B).
    partial = jnp.sum(masked)
    r = jax.lax.broadcasted_iota(jnp.int32, (8, 128), 0)
    l = jax.lax.broadcasted_iota(jnp.int32, (8, 128), 1)
    out_ref[...] = jnp.where((r == 0) & (l == 0), partial, 0.0)


def label_smoothing_loss(pred, target, *, classes, smoothing=0.1, tile_b=None):
    """Pallas implementation of LabelSmoothingLoss.forward.

    pred:   (B, C) float logits (f32 or bf16; math happens in f32)
    target: (B,)   int class indices
    returns scalar float32 loss (mean over batch)
    """
    b, c = pred.shape
    assert c == classes

    in_itemsize = jnp.dtype(pred.dtype).itemsize
    align = {4: 8, 2: 16, 1: 32}.get(in_itemsize, 8)

    vmem_limit = _vmem_limit_bytes()
    auto_tile = tile_b is None
    if auto_tile:
        # Resident bytes per batch row: 2x double-buffered input tile plus ~3
        # live f32 (TILE_B, C) temporaries (cast copy, shifted, exp) + slack.
        per_row_bytes = c * (2 * in_itemsize + 12) + 64
        budget = vmem_limit * 7 // 10
        tile_b = budget // per_row_bytes
    tile_b = max(align, (int(tile_b) // align) * align)
    tile_b = min(tile_b, _round_up(b, align))
    if auto_tile and b > align:
        # Guarantee >=2 grid steps so "parallel" shards over both TCs on v7x.
        tile_b = max(align, min(tile_b, _round_up(pl.cdiv(b, 2), align)))

    num_tiles = pl.cdiv(b, tile_b)

    # Labels are tiny: pad ONLY them (never the logits) and keep them resident
    # in VMEM via a constant index_map (single DMA, no per-step descriptors).
    b_lab = num_tiles * tile_b
    target2d = target.astype(jnp.int32).reshape(b, 1)
    if b_lab != b:
        target2d = jnp.pad(target2d, ((0, b_lab - b), (0, 0)))

    kernel = functools.partial(_label_smoothing_kernel,
                               smoothing=float(smoothing),
                               classes=int(classes),
                               total_b=int(b),
                               tile_b=int(tile_b))

    partials = pl.pallas_call(
        kernel,
        out_shape=jax.ShapeDtypeStruct((num_tiles * 8, 128), jnp.float32),
        grid=(num_tiles,),
        in_specs=[
            pl.BlockSpec((tile_b, c), lambda i: (i, 0)),   # streamed logits tile
            pl.BlockSpec((b_lab, 1), lambda i: (0, 0)),    # resident labels
        ],
        out_specs=pl.BlockSpec((8, 128), lambda i: (i, 0)),
        compiler_params=pltpu.CompilerParams(
            dimension_semantics=("parallel",),
            vmem_limit_bytes=int(vmem_limit),
        ),
    )(pred, target2d)

    # Only element [0,0] of each tile's block is nonzero -> exact total.
    return jnp.sum(partials) / jnp.float32(b)


def _reference_loss(pred, target, *, classes, smoothing=0.1):
    # Pure-JAX reference mirroring the PyTorch module.
    confidence = 1.0 - smoothing
    logp = jax.nn.log_softmax(pred.astype(jnp.float32), axis=-1)
    true_dist = jnp.full_like(logp, smoothing / (classes - 1))
    true_dist = true_dist.at[jnp.arange(pred.shape[0]), target].set(confidence)
    return jnp.mean(jnp.sum(-true_dist * logp, axis=-1))


if __name__ == "__main__":
    key = jax.random.PRNGKey(0)
    B, C = 8, 16
    k1, k2 = jax.random.split(key)
    pred = jax.random.normal(k1, (B, C), dtype=jnp.float32)
    target = jax.random.randint(k2, (B,), 0, C, dtype=jnp.int32)

    # f32 logits
    loss = jax.block_until_ready(
        label_smoothing_loss(pred, target, classes=C, smoothing=0.1))
    ref = _reference_loss(pred, target, classes=C, smoothing=0.1)
    assert jnp.allclose(loss, ref, atol=1e-5, rtol=1e-5), (loss, ref)

    # bf16 logits (halves HBM read traffic; compute stays f32)
    pred_bf16 = pred.astype(jnp.bfloat16)
    loss_bf16 = jax.block_until_ready(
        label_smoothing_loss(pred_bf16, target, classes=C, smoothing=0.1))
    ref_bf16 = _reference_loss(pred_bf16.astype(jnp.float32), target,
                               classes=C, smoothing=0.1)
    assert jnp.allclose(loss_bf16, ref_bf16, atol=1e-5, rtol=1e-5), (loss_bf16, ref_bf16)

    # Ragged batch + multi-tile grid (no logits padding; tail block masked in-kernel).
    B2, C2 = 70, 130
    pred2 = jax.random.normal(k1, (B2, C2), dtype=jnp.float32)
    target2 = jax.random.randint(k2, (B2,), 0, C2, dtype=jnp.int32)
    loss2 = jax.block_until_ready(
        label_smoothing_loss(pred2, target2, classes=C2, smoothing=0.1, tile_b=16))
    ref2 = _reference_loss(pred2, target2, classes=C2, smoothing=0.1)
    assert jnp.allclose(loss2, ref2, atol=1e-5, rtol=1e-5), (loss2, ref2)

    # Auto tile sizing on a ragged batch (exercises the >=2-tile megacore path).
    B3 = 11
    pred3 = jax.random.normal(k1, (B3, C), dtype=jnp.float32)
    target3 = jax.random.randint(k2, (B3,), 0, C, dtype=jnp.int32)
    loss3 = jax.block_until_ready(
        label_smoothing_loss(pred3, target3, classes=C, smoothing=0.1))
    ref3 = _reference_loss(pred3, target3, classes=C, smoothing=0.1)
    assert jnp.allclose(loss3, ref3, atol=1e-5, rtol=1e-5), (loss3, ref3)

    print("KERNEL_OK")
</pallas_src>

<mosaic_0001>
module attributes {stable_mosaic.version = 11 : i64} {
  func.func @_label_smoothing_kernel(%arg0: i32, %arg1: memref<8x16xf32, #tpu.memory_space<vmem>>, %arg2: memref<8x1xi32, #tpu.memory_space<vmem>>, %arg3: memref<8x128xf32, #tpu.memory_space<vmem>>) attributes {dimension_semantics = [#tpu.dimension_semantics<parallel>], iteration_bounds = array<i64: 1>, scalar_prefetch = 0 : i64, scratch_operands = 0 : i64, tpu.core_type = #tpu.core_type<tc>, window_params = [{transform_indices = @transform_0, window_bounds = array<i64: 8, 16>}, {pipeline_mode = #tpu.pipeline_mode<synchronous>, transform_indices = @transform_1, window_bounds = array<i64: 8, 1>}, {transform_indices = @transform_2, window_bounds = array<i64: 8, 128>}]} {
    %c0 = arith.constant 0 : index
    %c0_0 = arith.constant 0 : index
    %0 = vector.load %arg1[%c0, %c0_0] : memref<8x16xf32, #tpu.memory_space<vmem>>, vector<8x16xf32>
    %c8_i32 = arith.constant 8 : i32
    %1 = arith.muli %arg0, %c8_i32 : i32
    %2 = tpu.assume_multiple %1, 8 : i32
    %3 = arith.index_cast %2 : i32 to index
    %c0_1 = arith.constant 0 : index
    %4 = vector.load %arg2[%3, %c0_1] : memref<8x1xi32, #tpu.memory_space<vmem>>, vector<8x1xi32>
    %cst = arith.constant dense<0xFF800000> : vector<8xf32>
    %5 = vector.multi_reduction <maximumf>, %0, %cst [1] : vector<8x16xf32> to vector<8xf32>
    %6 = vector.shape_cast %5 : vector<8xf32> to vector<8x1xf32>
    %cst_2 = arith.constant dense<0.000000e+00> : vector<8xf32>
    %7 = vector.multi_reduction <add>, %0, %cst_2 [1] : vector<8x16xf32> to vector<8xf32>
    %8 = vector.shape_cast %7 : vector<8xf32> to vector<8x1xf32>
    %9 = tpu.iota {dimensions = array<i32: 1>} : vector<8x16xi32>
    %10 = vector.broadcast %4 : vector<8x1xi32> to vector<8x16xi32>
    %11 = arith.cmpi eq, %9, %10 : vector<8x16xi32>
    %cst_3 = arith.constant 0.000000e+00 : f32
    %12 = vector.broadcast %cst_3 : f32 to vector<8x16xf32>
    %13 = arith.select %11, %0, %12 : vector<8x16xi1>, vector<8x16xf32>
    %cst_4 = arith.constant dense<0.000000e+00> : vector<8xf32>
    %14 = vector.multi_reduction <add>, %13, %cst_4 [1] : vector<8x16xf32> to vector<8xf32>
    %15 = vector.shape_cast %14 : vector<8xf32> to vector<8x1xf32>
    %16 = vector.broadcast %6 : vector<8x1xf32> to vector<8x16xf32>
    %17 = arith.subf %0, %16 : vector<8x16xf32>
    %18 = math.exp %17 : vector<8x16xf32>
    %cst_5 = arith.constant dense<0.000000e+00> : vector<8xf32>
    %19 = vector.multi_reduction <add>, %18, %cst_5 [1] : vector<8x16xf32> to vector<8xf32>
    %20 = vector.shape_cast %19 : vector<8xf32> to vector<8x1xf32>
    %21 = math.log %20 : vector<8x1xf32>
    %22 = arith.addf %6, %21 : vector<8x1xf32>
    %cst_6 = arith.constant 0.00666666683 : f32
    %23 = vector.broadcast %cst_6 : f32 to vector<8x1xf32>
    %24 = arith.mulf %23, %8 : vector<8x1xf32>
    %25 = arith.subf %22, %24 : vector<8x1xf32>
    %cst_7 = arith.constant 0.893333315 : f32
    %26 = vector.broadcast %cst_7 : f32 to vector<8x1xf32>
    %27 = arith.mulf %26, %15 : vector<8x1xf32>
    %28 = arith.subf %25, %27 : vector<8x1xf32>
    %29 = tpu.iota {dimensions = array<i32: 0>} : vector<8x1xi32>
    %30 = vector.broadcast %2 : i32 to vector<8x1xi32>
    %31 = arith.addi %30, %29 : vector<8x1xi32>
    %c8_i32_8 = arith.constant 8 : i32
    %32 = vector.broadcast %c8_i32_8 : i32 to vector<8x1xi32>
    %33 = arith.cmpi slt, %31, %32 : vector<8x1xi32>
    %cst_9 = arith.constant 0.000000e+00 : f32
    %34 = vector.broadcast %cst_9 : f32 to vector<8x1xf32>
    %35 = arith.select %33, %28, %34 : vector<8x1xi1>, vector<8x1xf32>
    %36 = vector.shape_cast %35 : vector<8x1xf32> to vector<1x8x1xf32>
    %cst_10 = arith.constant dense<0.000000e+00> : vector<1xf32>
    %37 = vector.multi_reduction <add>, %36, %cst_10 [1, 2] : vector<1x8x1xf32> to vector<1xf32>
    %38 = vector.shape_cast %37 : vector<1xf32> to vector<1x1x1xf32>
    %39 = vector.extract %38[0, 0, 0] : f32 from vector<1x1x1xf32>
    %40 = tpu.iota {dimensions = array<i32: 0>} : vector<8x128xi32>
    %41 = tpu.iota {dimensions = array<i32: 1>} : vector<8x128xi32>
    %c0_i32 = arith.constant 0 : i32
    %42 = vector.broadcast %c0_i32 : i32 to vector<8x128xi32>
    %43 = arith.cmpi eq, %40, %42 : vector<8x128xi32>
    %c0_i32_11 = arith.constant 0 : i32
    %44 = vector.broadcast %c0_i32_11 : i32 to vector<8x128xi32>
    %45 = arith.cmpi eq, %41, %44 : vector<8x128xi32>
    %46 = arith.andi %43, %45 : vector<8x128xi1>
    %cst_12 = arith.constant 0.000000e+00 : f32
    %47 = vector.broadcast %39 : f32 to vector<8x128xf32>
    %48 = vector.broadcast %cst_12 : f32 to vector<8x128xf32>
    %49 = arith.select %46, %47, %48 : vector<8x128xi1>, vector<8x128xf32>
    %c0_13 = arith.constant 0 : index
    %c0_14 = arith.constant 0 : index
    %50 = vector.load %arg3[%c0_13, %c0_14] : memref<8x128xf32, #tpu.memory_space<vmem>>, vector<8x128xf32>
    tpu.vector_store %arg3[%c0_13, %c0_14], %49 {strides = array<i32>} : memref<8x128xf32, #tpu.memory_space<vmem>>, vector<8x128xf32>,
    return
  }
  func.func @transform_0(%arg0: i32) -> (i32, i32) {
    %c0_i32 = arith.constant 0 : i32
    %c0_i32_0 = arith.constant 0 : i32
    return %arg0, %c0_i32 : i32, i32
  }
  func.func @transform_1(%arg0: i32) -> (i32, i32) {
    %c0_i32 = arith.constant 0 : i32
    %c0_i32_0 = arith.constant 0 : i32
    %c0_i32_1 = arith.constant 0 : i32
    return %c0_i32, %c0_i32_0 : i32, i32
  }
  func.func @transform_2(%arg0: i32) -> (i32, i32) {
    %c0_i32 = arith.constant 0 : i32
    %c0_i32_0 = arith.constant 0 : i32
    return %arg0, %c0_i32 : i32, i32
  }
}

</mosaic_0001>

<llo_original>
// kernel: tpu_custom_call.1
$region0: #{tpu_custom_call.1}
  #allocation0 [shape = 'u32[]', space=smem, size = 0x4, offset = 0x4, fixed_abs, tag = 'smem constant byte address 0x4 - core index']
  #allocation1 [shape = 'u32[144,128]{1,0:T(1,128)}', space=vmem, size = 0x12000, scoped, tag = 'internal scratch']
  %s0 = inlined_call_operand.vmem [shape: f32[8,16], index: 0, kind: input, shape index: {}]
  %s1 = inlined_call_operand.vmem [shape: s32[8,1], index: 1, kind: input, shape index: {}]
  %s2 = inlined_call_operand.hbm [shape: f32[8,128], index: 2, kind: output, shape index: {}]
  %s3 = sld [smem:[#allocation0]]
  $region18: #{tpu_custom_call.1} parent=0
    _
  %s5 = ssub.s32 1, %s3
  %s6 = scalar_select 0, %s5, %s3
  $region1: #{tpu_custom_call.1} parent=0
    #allocation2 [shape = 'u8[4096]{0}', space=vmem, size = 0x1000, scoped, tag = 'output window, operand 0, single buffered']
    #allocation3 [shape = 's32[1]{0}', space=sflag, size = 0x4, scoped, tag = 'scoped memory for tpu_custom_call.1']
    %7 = vsyncpa [#allocation3], 0
    // Predicated region
    $region2: #{tpu_custom_call.1} parent=1 // pred_check
      _
    $region3: #{tpu_custom_call.1} parent=1 // pred_check_branch
      %9 = sbr.rel (0) target = $region5
    $region4: #{tpu_custom_call.1} parent=1 // pred_region
      _
    $region5: #{tpu_custom_call.1} parent=1 // pred_fallthru
      _
    // Predicated region
    $region6: #{tpu_custom_call.1} parent=1 // pred_check
      _
    $region7: #{tpu_custom_call.1} parent=1 // pred_check_branch
      %11 = sbr.rel (0) target = $region9
    $region8: #{tpu_custom_call.1} parent=1 // pred_region
      _
    $region9: #{tpu_custom_call.1} parent=1 // pred_fallthru
      _
    %v12 = vld [vmem:[%s0] sm:$0xff]
    %s13 = smul.u32 0, 8
    %s14 = scalar_lea.vmem %s1, %s13
    %v15 = vld [vmem:[%s14] sm:$0xff]
    %vm16 = vcmask 130048
    %v17 = vsel %vm16, %v12, -inf
    %18 = vmax.xlane.f32.xlu0 %v17
    %v19 = vpop.xlane.xlu0 %18
    %v20 = vsel %vm16, %v12, 0.0
    %21 = vadd.xlane.f32.xlu0 %v20
    %v22 = vpop.xlane.xlu0 %21
    %v23 = vlaneseq
    %v24 = vand.u32 %v23, 127
    %25 = vset.pattern.permute.xlu0 0
    %26 = vperm.xlu0 %25, %v15
    %v27 = vpop.permute.xlu0 %26
    %vm28 = vcmp.eq.s32.totalorder %v24, %v27
    %v29 = vsel %vm28, %v12, 0.0
    %v30 = vsel %vm16, %v29, 0.0
    %31 = vadd.xlane.f32.xlu0 %v30
    %v32 = vpop.xlane.xlu0 %31
    %v33 = vsub.f32 %v12, %v19
    %v34 = vmul.f32 %v33, 1.442695
    %v35 = vpow.pop %v34
    %v36 = vsel %vm16, %v35, 0.0
    %37 = vadd.xlane.f32.xlu0 %v36
    %v38 = vpop.xlane.xlu0 %37
    %v39 = vlog2.pop %v38
    %v40 = vmul.f32 %v39, 0.6931472
    %v41 = vadd.f32 %v19, %v40
    %v42 = vmul.f32 %v22, 0.006666667
    %v43 = vsub.f32 %v41, %v42
    %v44 = vmul.f32 %v32, 0.8933333
    %v45 = vsub.f32 %v43, %v44
    %v46 = vlaneseq
    %v47 = vshrl.u32 %v46, 7
    %v48 = vstv %s13
    %v49 = vadd.s32 %v48, %v47
    %vm50 = vcmp.lt.s32.totalorder %v49, 8
    %v51 = vsel %vm50, %v45, 0.0
    %vm52 = vcmask 7168
    %v53 = vsel %vm52, %v51, 0.0
    %54 = vadd.xlane.f32.xlu0 %v53
    %v55 = vpop.xlane.xlu0 %54
    %v56 = vrot.slane %v55, 4
    %v57 = vadd.f32 %v55, %v56
    %v58 = vrot.slane %v57, 2
    %v59 = vadd.f32 %v57, %v58
    %v60 = vrot.slane %v59, 1
    %v61 = vadd.f32 %v59, %v60
    %s62 = vtos %v61
    %vm63 = vcmp.eq.s32.totalorder %v47, 0
    %vm64 = vcmp.eq.s32.totalorder %v24, 0
    %vm65 = vmand %vm63, %vm64
    %v66 = vstv %s62
    %v67 = vsel %vm65, %v66, 0.0
    %68 = vst [vmem:[#allocation2] sm:$0xff] %v67
    // Predicated region
    $region10: #{tpu_custom_call.1} parent=1 // pred_check
      _
    $region11: #{tpu_custom_call.1} parent=1 // pred_check_branch
      %70 = sbr.rel (0) target = $region13
    $region12: #{tpu_custom_call.1} parent=1 // pred_region
      %s72 = ssub.s32 128, 128
      %73 = vsyncadd [#allocation3], %s72
      %s75 = sshll.u32 [#allocation2], 4
      %s76 = int_to_ptr.vmem [resolvable:$true] %s75
      %78 = dma.vmem_to_hbm [thread:$0]  %s76, 128, %s2, [#allocation3]
    $region13: #{tpu_custom_call.1} parent=1 // pred_fallthru
      _
    // Predicated region
    $region14: #{tpu_custom_call.1} parent=1 // pred_check
      _
    $region15: #{tpu_custom_call.1} parent=1 // pred_check_branch
      %80 = sbr.rel (0) target = $region17
    $region16: #{tpu_custom_call.1} parent=1 // pred_region
      %81 = dma.done [#allocation3], 128
    $region17: #{tpu_custom_call.1} parent=1 // pred_fallthru
      _
    %82 = vsyncpa [#allocation3], 1

</llo_original>
